<compile_context>
chip_gen: v6e
topology: v6e:2x2x1
jax: 0.10.0
libtpu: 0.0.40
codegen_flags: <defaults>
</compile_context>

<pallas_src>
import jax
import jax.numpy as jnp
from jax.experimental import pallas as pl
from jax.experimental.pallas import tpu as pltpu

LAMBDA_A = 10.0
LABEL_SMOOTHING = 0.1

# Per-tile f32 footprint target for one half-batch tile of logits. 2 MiB keeps
# the 4 double-buffered native-dtype input tiles plus f32 temps comfortably
# inside the 48 MiB scoped VMEM we request below.
_TILE_F32_BYTES_BUDGET = 2 * 1024 * 1024
_MAX_TILE_ROWS = 2048
_VMEM_LIMIT_BYTES = 48 * 1024 * 1024   # <= v7x 64 MiB physical; fine on v5e/v6e.


def _cdiv(a, b):
    return -(-a // b)


def _round_up(a, b):
    return _cdiv(a, b) * b


def _make_kernel(tile, num_classes, valid_rows, need_mask):
    eps = LABEL_SMOOTHING
    off_w = eps / num_classes                 # smoothed weight, non-target class
    on_w = 1.0 - eps + eps / num_classes      # smoothed weight, target class

    def kernel(fl_ref, fr_ref, ll_ref, lr_ref, ce_ref, pair_ref):
        xl = fl_ref[...].astype(jnp.float32)      # (T, C)
        xr = fr_ref[...].astype(jnp.float32)      # (T, C)
        ll = ll_ref[...]                          # (T, 1) int32
        lr = lr_ref[...]                          # (T, 1) int32
        t, c = xl.shape

        # Hoisted once per grid step (JAX does not CSE broadcast_in_dim).
        cls = jax.lax.broadcasted_iota(jnp.int32, (t, c), 1)

        def row_smoothed_ce(x, lab):
            # -(q . logp) = lse - sum_c q_c * z_c  with q the smoothed one-hot.
            m = jnp.max(x, axis=-1, keepdims=True)
            z = x - m
            lse = jnp.log(jnp.sum(jnp.exp(z), axis=-1, keepdims=True))
            w = jnp.where(cls == lab, jnp.float32(on_w), jnp.float32(off_w))
            return lse - jnp.sum(w * z, axis=-1, keepdims=True)        # (T, 1)

        ce_rows = row_smoothed_ce(xl, ll) + row_smoothed_ce(xr, lr)     # (T, 1)

        # Pairwise-confusion term (abs() is irrelevant under the L2 norm).
        diff = xl - xr
        norm = jnp.sqrt(jnp.sum(diff * diff, axis=-1, keepdims=True))
        pair_rows = norm * (ll != lr).astype(jnp.float32)               # (T, 1)

        if need_mask:
            # Zero out contributions from zero-padded rows of the half-batch.
            row0 = pl.program_id(0) * tile
            ridx = jax.lax.broadcasted_iota(jnp.int32, (t, 1), 0) + row0
            valid = (ridx < valid_rows).astype(jnp.float32)
            ce_rows = ce_rows * valid
            pair_rows = pair_rows * valid

        # In-kernel reduction to per-tile partial sums; write them into row 0
        # of this tile's (8, 1) output block (rows 1..7 stay zero).
        ce_sum = jnp.sum(ce_rows, axis=0, keepdims=True)                # (1, 1)
        pair_sum = jnp.sum(pair_rows, axis=0, keepdims=True)            # (1, 1)
        first_row = (jax.lax.broadcasted_iota(jnp.int32, (8, 1), 0) == 0
                     ).astype(jnp.float32)                              # (8, 1)
        ce_ref[...] = ce_sum * first_row
        pair_ref[...] = pair_sum * first_row

    return kernel


def _pick_tile(half, num_classes, itemsize):
    # Dtype-aware minimum tile: 8 rows (f32), 16 (bf16), 32 (8-bit) so packed
    # sublane layouts stay unmasked.
    min_tile = 8 * max(1, 4 // int(itemsize))
    budget_rows = _TILE_F32_BYTES_BUDGET // max(1, num_classes * 4)
    target = max(min_tile, min(_MAX_TILE_ROWS, (budget_rows // min_tile) * min_tile))

    if half <= target:
        if half % (2 * min_tile) == 0:
            return half // 2          # two zero-copy tiles (megacore-friendly)
        if half % min_tile == 0:
            return half               # one zero-copy tile
        return _round_up(half, min_tile)   # one padded + masked tile
    # half > target: prefer a zero-copy divisor in [target/2, target].
    cand = target
    while cand >= max(min_tile, target // 2):
        if half % cand == 0:
            return cand
        cand -= min_tile
    return target                      # padded path; waste < target rows


def pairwise_confusion_loss(features, labels, lambda_a=LAMBDA_A):
    """features: [B, C] float (f32/bf16), labels: [B] int.  Returns scalar f32."""
    B, C = features.shape
    if B % 2 != 0:
        raise ValueError("Incorrect batch size provided")
    half = B // 2
    labels = labels.astype(jnp.int32)

    tile = _pick_tile(half, C, jnp.dtype(features.dtype).itemsize)
    half_pad = _round_up(half, tile)
    num_tiles = half_pad // tile
    need_mask = half_pad != half

    kernel = _make_kernel(tile, C, half, need_mask)

    out_shape = (jax.ShapeDtypeStruct((num_tiles * 8, 1), jnp.float32),
                 jax.ShapeDtypeStruct((num_tiles * 8, 1), jnp.float32))
    out_specs = (pl.BlockSpec((8, 1), lambda i: (i, 0)),
                 pl.BlockSpec((8, 1), lambda i: (i, 0)))

    if not need_mask:
        # Aligned half-batch: left/right halves are delivered from the SAME
        # arrays by BlockSpecs whose right-half index maps are offset by
        # num_tiles (zero-copy, double-buffered DMA overlaps compute).
        labels2d = labels.reshape(B, 1)
        in_specs = [
            pl.BlockSpec((tile, C), lambda i: (i, 0)),                 # left feats
            pl.BlockSpec((tile, C), lambda i: (i + num_tiles, 0)),     # right feats
            pl.BlockSpec((tile, 1), lambda i: (i, 0)),                 # left labels
            pl.BlockSpec((tile, 1), lambda i: (i + num_tiles, 0)),     # right labels
        ]
        args = (features, features, labels2d, labels2d)
    else:
        # Unaligned half-batch: split + zero-pad each half up to half_pad rows;
        # padded rows are masked out inside the kernel.
        pad = half_pad - half
        fl = jnp.pad(features[:half], ((0, pad), (0, 0)))
        fr = jnp.pad(features[half:], ((0, pad), (0, 0)))
        ll = jnp.pad(labels[:half], (0, pad)).reshape(half_pad, 1)
        lr = jnp.pad(labels[half:], (0, pad)).reshape(half_pad, 1)
        in_specs = [
            pl.BlockSpec((tile, C), lambda i: (i, 0)),
            pl.BlockSpec((tile, C), lambda i: (i, 0)),
            pl.BlockSpec((tile, 1), lambda i: (i, 0)),
            pl.BlockSpec((tile, 1), lambda i: (i, 0)),
        ]
        args = (fl, fr, ll, lr)

    ce_parts, pair_parts = pl.pallas_call(
        kernel,
        out_shape=out_shape,
        grid_spec=pltpu.PrefetchScalarGridSpec(
            num_scalar_prefetch=0,
            grid=(num_tiles,),
            in_specs=in_specs,
            out_specs=out_specs,
        ),
        compiler_params=pltpu.CompilerParams(
            dimension_semantics=("parallel",),
            vmem_limit_bytes=_VMEM_LIMIT_BYTES,
        ),
    )(*args)

    inv_b = jnp.float32(1.0 / B)
    return (jnp.sum(ce_parts) + jnp.float32(lambda_a) * jnp.sum(pair_parts)) * inv_b


def _reference(features, labels, lambda_a=LAMBDA_A):
    """Pure-JAX reference mirroring the PyTorch module."""
    B, C = features.shape
    half = B // 2
    left, right = features[:half], features[half:]
    lab_l, lab_r = labels[:half], labels[half:]
    norm = jnp.linalg.norm(jnp.abs(left - right), ord=2, axis=1)
    pair = jnp.sum(norm * (lab_l != lab_r).astype(jnp.float32)) / B

    logp = jax.nn.log_softmax(features.astype(jnp.float32), axis=-1)
    onehot = jax.nn.one_hot(labels, C, dtype=jnp.float32)
    q = (1.0 - LABEL_SMOOTHING) * onehot + LABEL_SMOOTHING / C
    ce = -jnp.mean(jnp.sum(q * logp, axis=-1))
    return ce + lambda_a * pair


if __name__ == "__main__":
    key = jax.random.PRNGKey(0)
    kf, kl = jax.random.split(key)

    # 1) Aligned half-batch -> zero-copy, two-tile pipelined path (no padding).
    B, C = 64, 128
    f = jax.random.normal(kf, (B, C), dtype=jnp.float32)
    l = jax.random.randint(kl, (B,), 0, C, dtype=jnp.int32)
    out = pairwise_confusion_loss(f, l)
    jax.block_until_ready(out)
    ref = _reference(f, l)
    assert jnp.allclose(out, ref, rtol=1e-5, atol=1e-4), (out, ref)

    # 2) Unaligned half-batch -> padded + masked tiled path.
    B2, C2 = 44, 96
    f2 = jax.random.normal(kf, (B2, C2), dtype=jnp.float32)
    l2 = jax.random.randint(kl, (B2,), 0, C2, dtype=jnp.int32)
    out2 = pairwise_confusion_loss(f2, l2)
    jax.block_until_ready(out2)
    ref2 = _reference(f2, l2)
    assert jnp.allclose(out2, ref2, rtol=1e-5, atol=1e-4), (out2, ref2)

    # 3) Tiny batch, small class count (padded single-tile grid).
    B3, C3 = 10, 32
    f3 = jax.random.normal(kf, (B3, C3), dtype=jnp.float32)
    l3 = jax.random.randint(kl, (B3,), 0, C3, dtype=jnp.int32)
    out3 = pairwise_confusion_loss(f3, l3)
    jax.block_until_ready(out3)
    ref3 = _reference(f3, l3)
    assert jnp.allclose(out3, ref3, rtol=1e-5, atol=1e-4), (out3, ref3)

    # 4) bf16 inputs: native-dtype streaming, f32 upcast in-kernel.
    f4 = jax.random.normal(kf, (B, C), dtype=jnp.float32).astype(jnp.bfloat16)
    out4 = pairwise_confusion_loss(f4, l)
    jax.block_until_ready(out4)
    ref4 = _reference(f4.astype(jnp.float32), l)
    assert jnp.allclose(out4, ref4, rtol=1e-4, atol=1e-3), (out4, ref4)

    print("KERNEL_OK")
</pallas_src>

<mosaic_0001>
module attributes {stable_mosaic.version = 11 : i64} {
  func.func @kernel(%arg0: i32, %arg1: memref<16x128xf32, #tpu.memory_space<vmem>>, %arg2: memref<16x128xf32, #tpu.memory_space<vmem>>, %arg3: memref<16x1xi32, #tpu.memory_space<vmem>>, %arg4: memref<16x1xi32, #tpu.memory_space<vmem>>, %arg5: memref<8x1xf32, #tpu.memory_space<vmem>>, %arg6: memref<8x1xf32, #tpu.memory_space<vmem>>) attributes {dimension_semantics = [#tpu.dimension_semantics<parallel>], iteration_bounds = array<i64: 2>, scalar_prefetch = 0 : i64, scratch_operands = 0 : i64, tpu.core_type = #tpu.core_type<tc>, window_params = [{transform_indices = @transform_0, window_bounds = array<i64: 16, 128>}, {transform_indices = @transform_1, window_bounds = array<i64: 16, 128>}, {transform_indices = @transform_2, window_bounds = array<i64: 16, 1>}, {transform_indices = @transform_3, window_bounds = array<i64: 16, 1>}, {transform_indices = @transform_4, window_bounds = array<i64: 8, 1>}, {transform_indices = @transform_5, window_bounds = array<i64: 8, 1>}]} {
    %c0 = arith.constant 0 : index
    %c0_0 = arith.constant 0 : index
    %0 = vector.load %arg1[%c0, %c0_0] : memref<16x128xf32, #tpu.memory_space<vmem>>, vector<16x128xf32>
    %c0_1 = arith.constant 0 : index
    %c0_2 = arith.constant 0 : index
    %1 = vector.load %arg2[%c0_1, %c0_2] : memref<16x128xf32, #tpu.memory_space<vmem>>, vector<16x128xf32>
    %c0_3 = arith.constant 0 : index
    %c0_4 = arith.constant 0 : index
    %2 = vector.load %arg3[%c0_3, %c0_4] : memref<16x1xi32, #tpu.memory_space<vmem>>, vector<16x1xi32>
    %c0_5 = arith.constant 0 : index
    %c0_6 = arith.constant 0 : index
    %3 = vector.load %arg4[%c0_5, %c0_6] : memref<16x1xi32, #tpu.memory_space<vmem>>, vector<16x1xi32>
    %4 = tpu.iota {dimensions = array<i32: 1>} : vector<16x128xi32>
    %cst = arith.constant dense<0xFF800000> : vector<16xf32>
    %5 = vector.multi_reduction <maximumf>, %0, %cst [1] : vector<16x128xf32> to vector<16xf32>
    %6 = vector.shape_cast %5 : vector<16xf32> to vector<16x1xf32>
    %7 = vector.broadcast %6 : vector<16x1xf32> to vector<16x128xf32>
    %8 = arith.subf %0, %7 : vector<16x128xf32>
    %9 = math.exp %8 : vector<16x128xf32>
    %cst_7 = arith.constant dense<0.000000e+00> : vector<16xf32>
    %10 = vector.multi_reduction <add>, %9, %cst_7 [1] : vector<16x128xf32> to vector<16xf32>
    %11 = vector.shape_cast %10 : vector<16xf32> to vector<16x1xf32>
    %12 = math.log %11 : vector<16x1xf32>
    %13 = vector.broadcast %2 : vector<16x1xi32> to vector<16x128xi32>
    %14 = arith.cmpi eq, %4, %13 : vector<16x128xi32>
    %cst_8 = arith.constant 0.900781273 : f32
    %cst_9 = arith.constant 7.812500e-04 : f32
    %15 = vector.broadcast %cst_8 : f32 to vector<16x128xf32>
    %16 = vector.broadcast %cst_9 : f32 to vector<16x128xf32>
    %17 = arith.select %14, %15, %16 : vector<16x128xi1>, vector<16x128xf32>
    %18 = arith.mulf %17, %8 : vector<16x128xf32>
    %cst_10 = arith.constant dense<0.000000e+00> : vector<16xf32>
    %19 = vector.multi_reduction <add>, %18, %cst_10 [1] : vector<16x128xf32> to vector<16xf32>
    %20 = vector.shape_cast %19 : vector<16xf32> to vector<16x1xf32>
    %21 = arith.subf %12, %20 : vector<16x1xf32>
    %cst_11 = arith.constant dense<0xFF800000> : vector<16xf32>
    %22 = vector.multi_reduction <maximumf>, %1, %cst_11 [1] : vector<16x128xf32> to vector<16xf32>
    %23 = vector.shape_cast %22 : vector<16xf32> to vector<16x1xf32>
    %24 = vector.broadcast %23 : vector<16x1xf32> to vector<16x128xf32>
    %25 = arith.subf %1, %24 : vector<16x128xf32>
    %26 = math.exp %25 : vector<16x128xf32>
    %cst_12 = arith.constant dense<0.000000e+00> : vector<16xf32>
    %27 = vector.multi_reduction <add>, %26, %cst_12 [1] : vector<16x128xf32> to vector<16xf32>
    %28 = vector.shape_cast %27 : vector<16xf32> to vector<16x1xf32>
    %29 = math.log %28 : vector<16x1xf32>
    %30 = vector.broadcast %3 : vector<16x1xi32> to vector<16x128xi32>
    %31 = arith.cmpi eq, %4, %30 : vector<16x128xi32>
    %cst_13 = arith.constant 0.900781273 : f32
    %cst_14 = arith.constant 7.812500e-04 : f32
    %32 = vector.broadcast %cst_13 : f32 to vector<16x128xf32>
    %33 = vector.broadcast %cst_14 : f32 to vector<16x128xf32>
    %34 = arith.select %31, %32, %33 : vector<16x128xi1>, vector<16x128xf32>
    %35 = arith.mulf %34, %25 : vector<16x128xf32>
    %cst_15 = arith.constant dense<0.000000e+00> : vector<16xf32>
    %36 = vector.multi_reduction <add>, %35, %cst_15 [1] : vector<16x128xf32> to vector<16xf32>
    %37 = vector.shape_cast %36 : vector<16xf32> to vector<16x1xf32>
    %38 = arith.subf %29, %37 : vector<16x1xf32>
    %39 = arith.addf %21, %38 : vector<16x1xf32>
    %40 = arith.subf %0, %1 : vector<16x128xf32>
    %41 = arith.mulf %40, %40 : vector<16x128xf32>
    %cst_16 = arith.constant dense<0.000000e+00> : vector<16xf32>
    %42 = vector.multi_reduction <add>, %41, %cst_16 [1] : vector<16x128xf32> to vector<16xf32>
    %43 = vector.shape_cast %42 : vector<16xf32> to vector<16x1xf32>
    %44 = math.sqrt %43 : vector<16x1xf32>
    %45 = arith.cmpi ne, %2, %3 : vector<16x1xi32>
    %46 = arith.extui %45 : vector<16x1xi1> to vector<16x1xi32>
    %47 = arith.sitofp %46 : vector<16x1xi32> to vector<16x1xf32>
    %48 = arith.mulf %44, %47 : vector<16x1xf32>
    %cst_17 = arith.constant dense<0.000000e+00> : vector<1xf32>
    %49 = vector.multi_reduction <add>, %39, %cst_17 [0] : vector<16x1xf32> to vector<1xf32>
    %50 = vector.shape_cast %49 : vector<1xf32> to vector<1x1xf32>
    %cst_18 = arith.constant dense<0.000000e+00> : vector<1xf32>
    %51 = vector.multi_reduction <add>, %48, %cst_18 [0] : vector<16x1xf32> to vector<1xf32>
    %52 = vector.shape_cast %51 : vector<1xf32> to vector<1x1xf32>
    %53 = tpu.iota {dimensions = array<i32: 0>} : vector<8x1xi32>
    %c0_i32 = arith.constant 0 : i32
    %54 = vector.broadcast %c0_i32 : i32 to vector<8x1xi32>
    %55 = arith.cmpi eq, %53, %54 : vector<8x1xi32>
    %56 = arith.extui %55 : vector<8x1xi1> to vector<8x1xi32>
    %57 = arith.sitofp %56 : vector<8x1xi32> to vector<8x1xf32>
    %58 = vector.broadcast %50 : vector<1x1xf32> to vector<8x1xf32>
    %59 = arith.mulf %58, %57 : vector<8x1xf32>
    %c0_19 = arith.constant 0 : index
    %c0_20 = arith.constant 0 : index
    %60 = vector.load %arg5[%c0_19, %c0_20] : memref<8x1xf32, #tpu.memory_space<vmem>>, vector<8x1xf32>
    tpu.vector_store %arg5[%c0_19, %c0_20], %59 {strides = array<i32>} : memref<8x1xf32, #tpu.memory_space<vmem>>, vector<8x1xf32>,
    %61 = vector.broadcast %52 : vector<1x1xf32> to vector<8x1xf32>
    %62 = arith.mulf %61, %57 : vector<8x1xf32>
    %c0_21 = arith.constant 0 : index
    %c0_22 = arith.constant 0 : index
    %63 = vector.load %arg6[%c0_21, %c0_22] : memref<8x1xf32, #tpu.memory_space<vmem>>, vector<8x1xf32>
    tpu.vector_store %arg6[%c0_21, %c0_22], %62 {strides = array<i32>} : memref<8x1xf32, #tpu.memory_space<vmem>>, vector<8x1xf32>,
    return
  }
  func.func @transform_0(%arg0: i32) -> (i32, i32) {
    %c0_i32 = arith.constant 0 : i32
    %c0_i32_0 = arith.constant 0 : i32
    return %arg0, %c0_i32 : i32, i32
  }
  func.func @transform_1(%arg0: i32) -> (i32, i32) {
    %c2_i32 = arith.constant 2 : i32
    %0 = arith.addi %arg0, %c2_i32 : i32
    %c0_i32 = arith.constant 0 : i32
    %c0_i32_0 = arith.constant 0 : i32
    return %0, %c0_i32 : i32, i32
  }
  func.func @transform_2(%arg0: i32) -> (i32, i32) {
    %c0_i32 = arith.constant 0 : i32
    %c0_i32_0 = arith.constant 0 : i32
    return %arg0, %c0_i32 : i32, i32
  }
  func.func @transform_3(%arg0: i32) -> (i32, i32) {
    %c2_i32 = arith.constant 2 : i32
    %0 = arith.addi %arg0, %c2_i32 : i32
    %c0_i32 = arith.constant 0 : i32
    %c0_i32_0 = arith.constant 0 : i32
    return %0, %c0_i32 : i32, i32
  }
  func.func @transform_4(%arg0: i32) -> (i32, i32) {
    %c0_i32 = arith.constant 0 : i32
    %c0_i32_0 = arith.constant 0 : i32
    return %arg0, %c0_i32 : i32, i32
  }
  func.func @transform_5(%arg0: i32) -> (i32, i32) {
    %c0_i32 = arith.constant 0 : i32
    %c0_i32_0 = arith.constant 0 : i32
    return %arg0, %c0_i32 : i32, i32
  }
}

</mosaic_0001>

<llo_original>
// kernel: tpu_custom_call.1
$region0: #{tpu_custom_call.1}
  #allocation0 [shape = 'u32[]', space=smem, size = 0x4, offset = 0x4, fixed_abs, tag = 'smem constant byte address 0x4 - core index']
  #allocation1 [shape = 'u32[144,128]{1,0:T(1,128)}', space=vmem, size = 0x12000, scoped, tag = 'internal scratch']
  %s0 = inlined_call_operand.vmem [shape: f32[64,128], index: 0, kind: input, shape index: {}]
  %s1 = inlined_call_operand.vmem [shape: f32[64,128], index: 1, kind: input, shape index: {}]
  %s2 = inlined_call_operand.vmem [shape: s32[64,1], index: 2, kind: input, shape index: {}]
  %s3 = inlined_call_operand.vmem [shape: s32[64,1], index: 3, kind: input, shape index: {}]
  %s4 = inlined_call_operand.vmem [shape: f32[16,1], index: 4, kind: output, shape index: {0}]
  %s5 = inlined_call_operand.vmem [shape: f32[16,1], index: 5, kind: output, shape index: {1}]
  %6 = xla_tuple %s4, %s5
  %s7 = sld [smem:[#allocation0]]
  $region57: #{tpu_custom_call.1} parent=0
    _
  %s9 = ssub.s32 1, %s7
  %s10 = scalar_select 0, %s9, %s7
  loop: start=0, step=1, limit=4
  $region2: #{tpu_custom_call.1} parent=0 // loop_pre_header
    _
  $region3: #{tpu_custom_call.1} parent=0 // loop_header
    %s12 = sphi 0, %s16
    %p13 = scmp.ge.s32.totalorder %s12, 4
    %s22 = sphi 0, %s24
    %s25 = sphi 0, %s22
    %s26 = sphi 0, %s25
    %s42 = sphi 0, %s26
    %s50 = sphi 0, %s52
    %s53 = sphi 0, %s50
    %s54 = sphi 0, %s53
    %s70 = sphi 0, %s54
    %s76 = sphi 0, %s78
    %s79 = sphi 0, %s76
    %s80 = sphi 0, %s79
    %s96 = sphi 0, %s80
    %s104 = sphi 0, %s106
    %s107 = sphi 0, %s104
    %s108 = sphi 0, %s107
    %s124 = sphi 0, %s108
    %s130 = sphi 0, %s132
    %s133 = sphi 0, %s130
    %s134 = sphi 0, %s133
    %s150 = sphi 0, %s134
    %s156 = sphi 0, %s158
    %s159 = sphi 0, %s156
    %s160 = sphi 0, %s159
    %s176 = sphi 0, %s160
  $region4: #{tpu_custom_call.1} parent=0 // loop_header_branch
    %15 = sbr.rel (%p13) target = $region8
  $region5: #{tpu_custom_call.1} parent=0 // loop_body
    %s17 = ssub.s32 %s12, 1
    %s18 = ssub.s32 %s12, 2
    %s19 = sadd.s32 %s12, 1
    %s20 = ssub.s32 %s12, %s19
    %p21 = scmp.eq.s32.totalorder %s20, 0
    %s23 = sadd.s32 %s22, 1
    %s24 = scalar_select %p21, %s22, %s23
    %p27 = pneg %p21
    %p28 = scmp.eq.s32.totalorder %s12, 1
    %p29 = por %p27, %p28
    %p30 = scmp.ne.s32.totalorder %s22, %s25
    %p31 = scmp.eq.s32.totalorder %s12, 0
    %p32 = por %p30, %p31
    %p33 = scmp.ne.s32.totalorder %s22, %s25
    %p34 = scmp.eq.s32.totalorder %s17, 1
    %p35 = por %p33, %p34
    %p36 = scmp.ne.s32.totalorder %s25, %s26
    %p37 = scmp.eq.s32.totalorder %s17, 0
    %p38 = por %p36, %p37
    %p39 = scmp.ne.s32.totalorder %s25, %s26
    %p40 = scmp.eq.s32.totalorder %s18, 1
    %p41 = por %p39, %p40
    %p43 = scmp.ne.s32.totalorder %s26, %s42
    %p44 = scmp.eq.s32.totalorder %s18, 0
    %p45 = por %p43, %p44
    %s46 = sadd.s32 %s12, 2
    %s47 = sadd.s32 %s19, 2
    %s48 = ssub.s32 %s46, %s47
    %p49 = scmp.eq.s32.totalorder %s48, 0
    %s51 = sadd.s32 %s50, 1
    %s52 = scalar_select %p49, %s50, %s51
    %p55 = pneg %p49
    %p56 = scmp.eq.s32.totalorder %s12, 1
    %p57 = por %p55, %p56
    %p58 = scmp.ne.s32.totalorder %s50, %s53
    %p59 = scmp.eq.s32.totalorder %s12, 0
    %p60 = por %p58, %p59
    %p61 = scmp.ne.s32.totalorder %s50, %s53
    %p62 = scmp.eq.s32.totalorder %s17, 1
    %p63 = por %p61, %p62
    %p64 = scmp.ne.s32.totalorder %s53, %s54
    %p65 = scmp.eq.s32.totalorder %s17, 0
    %p66 = por %p64, %p65
    %p67 = scmp.ne.s32.totalorder %s53, %s54
    %p68 = scmp.eq.s32.totalorder %s18, 1
    %p69 = por %p67, %p68
    %p71 = scmp.ne.s32.totalorder %s54, %s70
    %p72 = scmp.eq.s32.totalorder %s18, 0
    %p73 = por %p71, %p72
    %s74 = ssub.s32 %s12, %s19
    %p75 = scmp.eq.s32.totalorder %s74, 0
    %s77 = sadd.s32 %s76, 1
    %s78 = scalar_select %p75, %s76, %s77
    %p81 = pneg %p75
    %p82 = scmp.eq.s32.totalorder %s12, 1
    %p83 = por %p81, %p82
    %p84 = scmp.ne.s32.totalorder %s76, %s79
    %p85 = scmp.eq.s32.totalorder %s12, 0
    %p86 = por %p84, %p85
    %p87 = scmp.ne.s32.totalorder %s76, %s79
    %p88 = scmp.eq.s32.totalorder %s17, 1
    %p89 = por %p87, %p88
    %p90 = scmp.ne.s32.totalorder %s79, %s80
    %p91 = scmp.eq.s32.totalorder %s17, 0
    %p92 = por %p90, %p91
    %p93 = scmp.ne.s32.totalorder %s79, %s80
    %p94 = scmp.eq.s32.totalorder %s18, 1
    %p95 = por %p93, %p94
    %p97 = scmp.ne.s32.totalorder %s80, %s96
    %p98 = scmp.eq.s32.totalorder %s18, 0
    %p99 = por %p97, %p98
    %s100 = sadd.s32 %s12, 2
    %s101 = sadd.s32 %s19, 2
    %s102 = ssub.s32 %s100, %s101
    %p103 = scmp.eq.s32.totalorder %s102, 0
    %s105 = sadd.s32 %s104, 1
    %s106 = scalar_select %p103, %s104, %s105
    %p109 = pneg %p103
    %p110 = scmp.eq.s32.totalorder %s12, 1
    %p111 = por %p109, %p110
    %p112 = scmp.ne.s32.totalorder %s104, %s107
    %p113 = scmp.eq.s32.totalorder %s12, 0
    %p114 = por %p112, %p113
    %p115 = scmp.ne.s32.totalorder %s104, %s107
    %p116 = scmp.eq.s32.totalorder %s17, 1
    %p117 = por %p115, %p116
    %p118 = scmp.ne.s32.totalorder %s107, %s108
    %p119 = scmp.eq.s32.totalorder %s17, 0
    %p120 = por %p118, %p119
    %p121 = scmp.ne.s32.totalorder %s107, %s108
    %p122 = scmp.eq.s32.totalorder %s18, 1
    %p123 = por %p121, %p122
    %p125 = scmp.ne.s32.totalorder %s108, %s124
    %p126 = scmp.eq.s32.totalorder %s18, 0
    %p127 = por %p125, %p126
    %s128 = ssub.s32 %s12, %s19
    %p129 = scmp.eq.s32.totalorder %s128, 0
    %s131 = sadd.s32 %s130, 1
    %s132 = scalar_select %p129, %s130, %s131
    %p135 = pneg %p129
    %p136 = scmp.eq.s32.totalorder %s12, 1
    %p137 = por %p135, %p136
    %p138 = scmp.ne.s32.totalorder %s130, %s133
    %p139 = scmp.eq.s32.totalorder %s12, 0
    %p140 = por %p138, %p139
    %p141 = scmp.ne.s32.totalorder %s130, %s133
    %p142 = scmp.eq.s32.totalorder %s17, 1
    %p143 = por %p141, %p142
    %p144 = scmp.ne.s32.totalorder %s133, %s134
    %p145 = scmp.eq.s32.totalorder %s17, 0
    %p146 = por %p144, %p145
    %p147 = scmp.ne.s32.totalorder %s133, %s134
    %p148 = scmp.eq.s32.totalorder %s18, 1
    %p149 = por %p147, %p148
    %p151 = scmp.ne.s32.totalorder %s134, %s150
    %p152 = scmp.eq.s32.totalorder %s18, 0
    %p153 = por %p151, %p152
    %s154 = ssub.s32 %s12, %s19
    %p155 = scmp.eq.s32.totalorder %s154, 0
    %s157 = sadd.s32 %s156, 1
    %s158 = scalar_select %p155, %s156, %s157
    %p161 = pneg %p155
    %p162 = scmp.eq.s32.totalorder %s12, 1
    %p163 = por %p161, %p162
    %p164 = scmp.ne.s32.totalorder %s156, %s159
    %p165 = scmp.eq.s32.totalorder %s12, 0
    %p166 = por %p164, %p165
    %p167 = scmp.ne.s32.totalorder %s156, %s159
    %p168 = scmp.eq.s32.totalorder %s17, 1
    %p169 = por %p167, %p168
    %p170 = scmp.ne.s32.totalorder %s159, %s160
    %p171 = scmp.eq.s32.totalorder %s17, 0
    %p172 = por %p170, %p171
    %p173 = scmp.ne.s32.totalorder %s159, %s160
    %p174 = scmp.eq.s32.totalorder %s18, 1
    %p175 = por %p173, %p174
    %p177 = scmp.ne.s32.totalorder %s160, %s176
    %p178 = scmp.eq.s32.totalorder %s18, 0
    %p179 = por %p177, %p178
    %p180 = scmp.le.s32.totalorder 1, %s12
    %p181 = scmp.lt.s32.totalorder %s12, 3
    %p182 = pnand %p180, %p181
    %p183 = pneg %p182
    // Predicated region
    $region9: #{tpu_custom_call.1} parent=5 // pred_check
      _
    $region10: #{tpu_custom_call.1} parent=5 // pred_check_branch
      %185 = sbr.rel (%p182) target = $region12
    $region11: #{tpu_custom_call.1} parent=5 // pred_region
      %s186 = ssub.s32 %s12, 1
    $region12: #{tpu_custom_call.1} parent=5 // pred_fallthru
      _
    %p187 = scmp.lt.s32.totalorder %s12, 2
    // Predicated region
    $region13: #{tpu_custom_call.1} parent=5 // pred_check
      %p188 = pneg %p187
    $region14: #{tpu_custom_call.1} parent=5 // pred_check_branch
      %190 = sbr.rel (%p188) target = $region16
    $region15: #{tpu_custom_call.1} parent=5 // pred_region
      // Predicated region
      $region17: #{tpu_custom_call.1} parent=15 // pred_check
        %p191 = pneg %p32
      $region18: #{tpu_custom_call.1} parent=15 // pred_check_branch
        %193 = sbr.rel (%p191) target = $region20
      $region19: #{tpu_custom_call.1} parent=15 // pred_region
        %s194 = smul.u32 2, %s12
        %p195 = scmp.lt.s32.totalorder %s194, 7
        %s196 = scalar_select %p195, %s194, 7
        %s197 = smul.addr %s196, 8
        %s198 = scalar_lea.vmem %s0, %s197
        %s199 = smul.u32 2, %s12
      $region20: #{tpu_custom_call.1} parent=15 // pred_fallthru
        _
      // Predicated region
      $region21: #{tpu_custom_call.1} parent=15 // pred_check
        %p200 = pneg %p60
      $region22: #{tpu_custom_call.1} parent=15 // pred_check_branch
        %202 = sbr.rel (%p200) target = $region24
      $region23: #{tpu_custom_call.1} parent=15 // pred_region
        %s203 = sadd.s32 %s12, 2
        %s204 = smul.u32 2, %s203
        %p205 = scmp.lt.s32.totalorder %s204, 7
        %s206 = scalar_select %p205, %s204, 7
        %s207 = smul.addr %s206, 8
        %s208 = scalar_lea.vmem %s1, %s207
        %s209 = sadd.s32 %s12, 2
        %s210 = smul.u32 2, %s209
      $region24: #{tpu_custom_call.1} parent=15 // pred_fallthru
        _
      // Predicated region
      $region25: #{tpu_custom_call.1} parent=15 // pred_check
        %p211 = pneg %p86
      $region26: #{tpu_custom_call.1} parent=15 // pred_check_branch
        %213 = sbr.rel (%p211) target = $region28
      $region27: #{tpu_custom_call.1} parent=15 // pred_region
        %s214 = smul.u32 2, %s12
        %p215 = scmp.lt.s32.totalorder %s214, 7
        %s216 = scalar_select %p215, %s214, 7
        %s217 = smul.addr %s216, 8
        %s218 = scalar_lea.vmem %s2, %s217
        %s219 = smul.u32 2, %s12
      $region28: #{tpu_custom_call.1} parent=15 // pred_fallthru
        _
      // Predicated region
      $region29: #{tpu_custom_call.1} parent=15 // pred_check
        %p220 = pneg %p114
      $region30: #{tpu_custom_call.1} parent=15 // pred_check_branch
        %222 = sbr.rel (%p220) target = $region32
      $region31: #{tpu_custom_call.1} parent=15 // pred_region
        %s223 = sadd.s32 %s12, 2
        %s224 = smul.u32 2, %s223
        %p225 = scmp.lt.s32.totalorder %s224, 7
        %s226 = scalar_select %p225, %s224, 7
        %s227 = smul.addr %s226, 8
        %s228 = scalar_lea.vmem %s3, %s227
        %s229 = sadd.s32 %s12, 2
        %s230 = smul.u32 2, %s229
      $region32: #{tpu_custom_call.1} parent=15 // pred_fallthru
        _
    $region16: #{tpu_custom_call.1} parent=5 // pred_fallthru
      _
    %p231 = scmp.le.s32.totalorder 1, %s12
    %p232 = scmp.lt.s32.totalorder %s12, 3
    %p233 = pnand %p231, %p232
    %p234 = pneg %p233
    // Predicated region
    $region33: #{tpu_custom_call.1} parent=5 // pred_check
      _
    $region34: #{tpu_custom_call.1} parent=5 // pred_check_branch
      %236 = sbr.rel (%p233) target = $region36
    $region35: #{tpu_custom_call.1} parent=5 // pred_region
      %s237 = ssub.s32 %s12, 1
      %s238 = smul.u32 2, %s17
      %p239 = scmp.lt.s32.totalorder %s238, 7
      %s240 = scalar_select %p239, %s238, 7
      %s241 = smul.addr %s240, 8
      %s242 = scalar_lea.vmem %s0, %s241
      %p243 = pneg %p38
      %p244 = pneg %p35
      %s245 = sadd.s32 %s17, 2
      %s246 = smul.u32 2, %s245
      %p247 = scmp.lt.s32.totalorder %s246, 7
      %s248 = scalar_select %p247, %s246, 7
      %s249 = smul.addr %s248, 8
      %s250 = scalar_lea.vmem %s1, %s249
      %p251 = pneg %p66
      %p252 = pneg %p63
      %s253 = smul.u32 2, %s17
      %p254 = scmp.lt.s32.totalorder %s253, 7
      %s255 = scalar_select %p254, %s253, 7
      %s256 = smul.addr %s255, 8
      %s257 = scalar_lea.vmem %s2, %s256
      %p258 = pneg %p92
      %p259 = pneg %p89
      %s260 = sadd.s32 %s17, 2
      %s261 = smul.u32 2, %s260
      %p262 = scmp.lt.s32.totalorder %s261, 7
      %s263 = scalar_select %p262, %s261, 7
      %s264 = smul.addr %s263, 8
      %s265 = scalar_lea.vmem %s3, %s264
      %p266 = pneg %p120
      %p267 = pneg %p117
      %p268 = pneg %p146
      %p269 = pneg %p143
      %p270 = scmp.lt.s32.totalorder %s17, 1
      %s271 = scalar_select %p270, %s17, 1
      %s272 = smul.addr %s271, 8
      %s273 = scalar_lea.vmem %s4, %s272
      %p274 = pneg %p172
      %p275 = pneg %p169
      %p276 = scmp.lt.s32.totalorder %s17, 1
      %s277 = scalar_select %p276, %s17, 1
      %s278 = smul.addr %s277, 8
      %s279 = scalar_lea.vmem %s5, %s278
      %s280 = smul.u32 2, %s17
      %p281 = scmp.lt.s32.totalorder %s280, 7
      %s282 = scalar_select %p281, %s280, 7
      %s283 = smul.addr %s282, 8
      %s284 = scalar_lea.vmem %s0, %s283
      %s285 = smul.u32 2, %s17
      %s286 = sadd.s32 %s17, 2
      %s287 = smul.u32 2, %s286
      %p288 = scmp.lt.s32.totalorder %s287, 7
      %s289 = scalar_select %p288, %s287, 7
      %s290 = smul.addr %s289, 8
      %s291 = scalar_lea.vmem %s1, %s290
      %s292 = sadd.s32 %s17, 2
      %s293 = smul.u32 2, %s292
      %s294 = smul.u32 2, %s17
      %p295 = scmp.lt.s32.totalorder %s294, 7
      %s296 = scalar_select %p295, %s294, 7
      %s297 = smul.addr %s296, 8
      %s298 = scalar_lea.vmem %s2, %s297
      %s299 = smul.u32 2, %s17
      %s300 = sadd.s32 %s17, 2
      %s301 = smul.u32 2, %s300
      %p302 = scmp.lt.s32.totalorder %s301, 7
      %s303 = scalar_select %p302, %s301, 7
      %s304 = smul.addr %s303, 8
      %s305 = scalar_lea.vmem %s3, %s304
      %s306 = sadd.s32 %s17, 2
      %s307 = smul.u32 2, %s306
      %p308 = scmp.lt.s32.totalorder %s17, 1
      %s309 = scalar_select %p308, %s17, 1
      %s310 = smul.addr %s309, 8
      %s311 = scalar_lea.vmem %s4, %s310
      %p312 = scmp.lt.s32.totalorder %s17, 1
      %s313 = scalar_select %p312, %s17, 1
      %s314 = smul.addr %s313, 8
      %s315 = scalar_lea.vmem %s5, %s314
      %v316 = vld [vmem:[%s284] sm:$0xff]
      %v317 = vld [vmem:[%s284 + $0x8] sm:$0xff]
      %v318 = vld [vmem:[%s291] sm:$0xff]
      %v319 = vld [vmem:[%s291 + $0x8] sm:$0xff]
      %v320 = vld [vmem:[%s298] sm:$0xff]
      %v321 = vld [vmem:[%s298 + $0x8] sm:$0xff]
      %v322 = vld [vmem:[%s305] sm:$0xff]
      %v323 = vld [vmem:[%s305 + $0x8] sm:$0xff]
      %v324 = vlaneseq
      %v325 = vand.u32 %v324, 127
      %326 = vmax.xlane.f32.xlu0 %v316
      %v327 = vpop.xlane.xlu0 %326
      %328 = vmax.xlane.f32.xlu0 %v317
      %v329 = vpop.xlane.xlu0 %328
      %v330 = vsub.f32 %v316, %v327
      %v331 = vsub.f32 %v317, %v329
      %v332 = vmul.f32 %v330, 1.442695
      %v333 = vpow.pop %v332
      %v334 = vmul.f32 %v331, 1.442695
      %v335 = vpow.pop %v334
      %336 = vadd.xlane.f32.xlu0 %v333
      %v337 = vpop.xlane.xlu0 %336
      %338 = vadd.xlane.f32.xlu0 %v335
      %v339 = vpop.xlane.xlu0 %338
      %v340 = vlog2.pop %v337
      %v341 = vmul.f32 %v340, 0.6931472
      %v342 = vlog2.pop %v339
      %v343 = vmul.f32 %v342, 0.6931472
      %344 = vset.pattern.permute.xlu0 0
      %345 = vperm.xlu0 %344, %v320
      %v346 = vpop.permute.xlu0 %345
      %347 = vset.pattern.permute.xlu0 0
      %348 = vperm.xlu0 %347, %v321
      %v349 = vpop.permute.xlu0 %348
      %vm350 = vcmp.eq.s32.totalorder %v325, %v346
      %vm351 = vcmp.eq.s32.totalorder %v325, %v349
      %v352 = vsel %vm350, 0.9007813, 0.00078125
      %v353 = vsel %vm351, 0.9007813, 0.00078125
      %v354 = vmul.f32 %v352, %v330
      %v355 = vmul.f32 %v353, %v331
      %356 = vadd.xlane.f32.xlu0 %v354
      %v357 = vpop.xlane.xlu0 %356
      %358 = vadd.xlane.f32.xlu0 %v355
      %v359 = vpop.xlane.xlu0 %358
      %v360 = vsub.f32 %v341, %v357
      %v361 = vsub.f32 %v343, %v359
      %362 = vmax.xlane.f32.xlu0 %v318
      %v363 = vpop.xlane.xlu0 %362
      %364 = vmax.xlane.f32.xlu0 %v319
      %v365 = vpop.xlane.xlu0 %364
      %v366 = vsub.f32 %v318, %v363
      %v367 = vsub.f32 %v319, %v365
      %v368 = vmul.f32 %v366, 1.442695
      %v369 = vpow.pop %v368
      %v370 = vmul.f32 %v367, 1.442695
      %v371 = vpow.pop %v370
      %372 = vadd.xlane.f32.xlu0 %v369
      %v373 = vpop.xlane.xlu0 %372
      %374 = vadd.xlane.f32.xlu0 %v371
      %v375 = vpop.xlane.xlu0 %374
      %v376 = vlog2.pop %v373
      %v377 = vmul.f32 %v376, 0.6931472
      %v378 = vlog2.pop %v375
      %v379 = vmul.f32 %v378, 0.6931472
      %380 = vset.pattern.permute.xlu0 0
      %381 = vperm.xlu0 %380, %v322
      %v382 = vpop.permute.xlu0 %381
      %383 = vset.pattern.permute.xlu0 0
      %384 = vperm.xlu0 %383, %v323
      %v385 = vpop.permute.xlu0 %384
      %vm386 = vcmp.eq.s32.totalorder %v325, %v382
      %vm387 = vcmp.eq.s32.totalorder %v325, %v385
      %v388 = vsel %vm386, 0.9007813, 0.00078125
      %v389 = vsel %vm387, 0.9007813, 0.00078125
      %v390 = vmul.f32 %v388, %v366
      %v391 = vmul.f32 %v389, %v367
      %392 = vadd.xlane.f32.xlu0 %v390
      %v393 = vpop.xlane.xlu0 %392
      %394 = vadd.xlane.f32.xlu0 %v391
      %v395 = vpop.xlane.xlu0 %394
      %v396 = vsub.f32 %v377, %v393
      %v397 = vsub.f32 %v379, %v395
      %v398 = vadd.f32 %v360, %v396
      %v399 = vadd.f32 %v361, %v397
      %v400 = vsub.f32 %v316, %v318
      %v401 = vsub.f32 %v317, %v319
      %v402 = vmul.f32 %v400, %v400
      %v403 = vmul.f32 %v401, %v401
      %404 = vadd.xlane.f32.xlu0 %v402
      %v405 = vpop.xlane.xlu0 %404
      %406 = vadd.xlane.f32.xlu0 %v403
      %v407 = vpop.xlane.xlu0 %406
      %v408 = vrsqrt.pop %v405
      %v409 = vmul.f32 %v405, %v408
      %vm410 = vcmp.eq.f32.partialorder %v405, inf
      %v411 = vsel %vm410, %v405, %v409
      %vm412 = vcmp.eq.f32.partialorder %v405, 0.0
      %v413 = vand.u32 %v405, 2147483648
      %v414 = vsel %vm412, %v413, %v411
      %v415 = vrsqrt.pop %v407
      %v416 = vmul.f32 %v407, %v415
      %vm417 = vcmp.eq.f32.partialorder %v407, inf
      %v418 = vsel %vm417, %v407, %v416
      %vm419 = vcmp.eq.f32.partialorder %v407, 0.0
      %v420 = vand.u32 %v407, 2147483648
      %v421 = vsel %vm419, %v420, %v418
      %vm422 = vcmp.ne.s32.totalorder %v320, %v322
      %vm423 = vcmp.ne.s32.totalorder %v321, %v323
      %v424 = vsel %vm422, 1, 0
      %v425 = vsel %vm423, 1, 0
      %v426 = vcvt.s32.f32 %v424
      %v427 = vcvt.s32.f32 %v425
      %v428 = vmul.f32 %v414, %v426
      %v429 = vmul.f32 %v421, %v427
      %v430 = vadd.f32 %v398, %v399
      %v431 = vrot.slane %v430, 4
      %v432 = vadd.f32 %v430, %v431
      %v433 = vrot.slane %v432, 2
      %v434 = vadd.f32 %v432, %v433
      %v435 = vrot.slane %v434, 1
      %v436 = vadd.f32 %v434, %v435
      %vm437 = vcmask 7168
      %v438 = vsel %vm437, %v428, 0.0
      %v439 = vsel %vm437, %v429, 0.0
      %v440 = vadd.f32 %v438, %v439
      %v441 = vrot.slane %v440, 4
      %v442 = vadd.f32 %v440, %v441
      %v443 = vrot.slane %v442, 2
      %v444 = vadd.f32 %v442, %v443
      %v445 = vrot.slane %v444, 1
      %v446 = vadd.f32 %v444, %v445
      %v447 = vlaneseq
      %v448 = vshrl.u32 %v447, 7
      %vm449 = vcmp.eq.s32.totalorder %v448, 0
      %v450 = vsel %vm449, 1, 0
      %v451 = vcvt.s32.f32 %v450
      %v452 = vmul.f32 %v436, %v451
      %453 = vst.msk [vmem:[%s311] sm:$0xff] %vm437, %v452
      %v454 = vmul.f32 %v446, %v451
      %455 = vst.msk [vmem:[%s315] sm:$0xff] %vm437, %v454
      %p456 = scmp.lt.s32.totalorder %s17, 1
      %s457 = scalar_select %p456, %s17, 1
      %s458 = smul.addr %s457, 8
      %s459 = scalar_lea.vmem %s4, %s458
      %p460 = scmp.lt.s32.totalorder %s17, 1
      %s461 = scalar_select %p460, %s17, 1
      %s462 = smul.addr %s461, 8
      %s463 = scalar_lea.vmem %s5, %s462
      // Predicated region
      $region37: #{tpu_custom_call.1} parent=35 // pred_check
        %p464 = pneg %p143
      $region38: #{tpu_custom_call.1} parent=35 // pred_check_branch
        %466 = sbr.rel (%p464) target = $region40
      $region39: #{tpu_custom_call.1} parent=35 // pred_region
        _
      $region40: #{tpu_custom_call.1} parent=35 // pred_fallthru
        _
      // Predicated region
      $region41: #{tpu_custom_call.1} parent=35 // pred_check
        %p467 = pneg %p169
      $region42: #{tpu_custom_call.1} parent=35 // pred_check_branch
        %469 = sbr.rel (%p467) target = $region44
      $region43: #{tpu_custom_call.1} parent=35 // pred_region
        _
      $region44: #{tpu_custom_call.1} parent=35 // pred_fallthru
        _
    $region36: #{tpu_custom_call.1} parent=5 // pred_fallthru
      _
    %p470 = scmp.le.s32.totalorder 2, %s12
    // Predicated region
    $region45: #{tpu_custom_call.1} parent=5 // pred_check
      %p471 = pneg %p470
    $region46: #{tpu_custom_call.1} parent=5 // pred_check_branch
      %473 = sbr.rel (%p471) target = $region48
    $region47: #{tpu_custom_call.1} parent=5 // pred_region
      %s474 = ssub.s32 %s12, 2
      // Predicated region
      $region49: #{tpu_custom_call.1} parent=47 // pred_check
        %p475 = pneg %p149
      $region50: #{tpu_custom_call.1} parent=47 // pred_check_branch
        %477 = sbr.rel (%p475) target = $region52
      $region51: #{tpu_custom_call.1} parent=47 // pred_region
        %p478 = scmp.lt.s32.totalorder %s18, 1
        %s479 = scalar_select %p478, %s18, 1
        %s480 = smul.addr %s479, 8
        %s481 = scalar_lea.vmem %s4, %s480
      $region52: #{tpu_custom_call.1} parent=47 // pred_fallthru
        _
      // Predicated region
      $region53: #{tpu_custom_call.1} parent=47 // pred_check
        %p482 = pneg %p175
      $region54: #{tpu_custom_call.1} parent=47 // pred_check_branch
        %484 = sbr.rel (%p482) target = $region56
      $region55: #{tpu_custom_call.1} parent=47 // pred_region
        %p485 = scmp.lt.s32.totalorder %s18, 1
        %s486 = scalar_select %p485, %s18, 1
        %s487 = smul.addr %s486, 8
        %s488 = scalar_lea.vmem %s5, %s487
      $region56: #{tpu_custom_call.1} parent=47 // pred_fallthru
        _
    $region48: #{tpu_custom_call.1} parent=5 // pred_fallthru
      _
  $region6: #{tpu_custom_call.1} parent=0 // loop_footer
    %s16 = sadd.s32 1, %s12
  $region7: #{tpu_custom_call.1} parent=0 // loop_footer_branch
    %11 = sbr.rel target = $region3
  $region8: #{tpu_custom_call.1} parent=0 // loop_exit
    _

</llo_original>
